<compile_context>
chip_gen: v7x
topology: tpu7x:2x2x1
jax: 0.10.0
libtpu: 0.0.40
codegen_flags: <defaults>
</compile_context>

<pallas_src>
import functools

import jax
import jax.numpy as jnp
from jax.experimental import pallas as pl
from jax.experimental.pallas import tpu as pltpu


def _round_up(x, m):
    return (x + m - 1) // m * m


def _tpu_generation():
    try:
        kind = jax.devices()[0].device_kind.lower()
    except Exception:
        return "unknown"
    if "v7" in kind:
        return "v7x"
    if "v6" in kind:
        return "v6e"
    if "v5" in kind:
        return "v5e"
    return "unknown"


def _vmem_capacity_bytes(gen):
    try:
        return int(pltpu.get_tpu_info().vmem_capacity_bytes)
    except Exception:
        return (64 << 20) if gen == "v7x" else (128 << 20)


def _spec(shape, index_map, buffer_count=None):
    """BlockSpec with optional buffer count (falls back if unsupported)."""
    if buffer_count is None:
        return pl.BlockSpec(shape, index_map)
    try:
        return pl.BlockSpec(shape, index_map,
                            pipeline_mode=pl.Buffered(buffer_count))
    except Exception:
        return pl.BlockSpec(shape, index_map)


def _select_tiles(gen, M, emb, hid, itemsize, use_acc, usable_vmem,
                  tile_m, tile_h):
    """Generation/dtype/M-aware tile selection with a VMEM-budget shrink."""
    sub = max(8, 32 // itemsize)            # sublane multiple for row tiles
    hid_al = _round_up(hid, 128)

    if tile_m is None:
        if M <= 256:
            tile_m = 256                    # decode / tiny prefill
        elif gen in ("v5e", "v6e"):
            tile_m = 1024                   # raise flop/byte on streamed weights
        else:                               # v7x / unknown: smaller VMEM
            tile_m = 512
    if tile_h is None:
        if gen == "v5e":
            tile_h = 1024                   # fewer acc RMW steps (1 vst slot)
        elif gen == "v7x":
            tile_h = 256 if itemsize <= 2 else 128
        else:                               # v6e / unknown
            tile_h = 512 if itemsize <= 2 else 256

    tile_m = _round_up(min(tile_m, _round_up(M, sub)), sub)
    tile_h = _round_up(min(tile_h, hid_al), 128)

    # v7x megacore: make sure the parallel row axis has >= 2 tiles at small M.
    if gen == "v7x" and _round_up(M, tile_m) // tile_m == 1 and M > sub:
        tile_m = _round_up((M + 1) // 2, sub)

    def need(tm, th):
        return (tm * emb * itemsize              # x tile (single-buffered)
                + 2 * 2 * emb * th * itemsize    # w1 + w2 (double-buffered)
                + 2 * th * emb * itemsize        # w3 (double-buffered)
                + tm * emb * itemsize            # out tile (single-buffered)
                + (tm * emb * 4 if use_acc else 0)
                + 3 * tm * th * 4)               # h1/h2/gated f32 temporaries

    while need(tile_m, tile_h) > usable_vmem and tile_h > 128:
        tile_h = max(128, _round_up(tile_h // 2, 128))
    while need(tile_m, tile_h) > usable_vmem and tile_m > sub:
        tile_m = max(sub, _round_up(tile_m // 2, sub))

    return tile_m, tile_h, need(tile_m, tile_h)


def _ffn_kernel_acc(x_ref, w1_ref, w2_ref, w3_ref, o_ref, acc_ref):
    """SwiGLU step with f32 VMEM accumulator (non-f32 output dtypes)."""
    j = pl.program_id(1)

    @pl.when(j == 0)
    def _():
        acc_ref[...] = jnp.zeros_like(acc_ref)

    x = x_ref[...]
    h1 = jnp.dot(x, w1_ref[...], preferred_element_type=jnp.float32)
    h2 = jnp.dot(x, w2_ref[...], preferred_element_type=jnp.float32)
    gated = (h1 * jax.nn.sigmoid(h1)) * h2
    acc_ref[...] += jnp.dot(gated.astype(x.dtype), w3_ref[...],
                            preferred_element_type=jnp.float32)

    @pl.when(j == pl.num_programs(1) - 1)
    def _():
        o_ref[...] = acc_ref[...].astype(o_ref.dtype)


def _ffn_kernel_f32(x_ref, w1_ref, w2_ref, w3_ref, o_ref):
    """SwiGLU step accumulating directly into the (f32) output block."""
    j = pl.program_id(1)

    @pl.when(j == 0)
    def _():
        o_ref[...] = jnp.zeros_like(o_ref)

    x = x_ref[...]
    h1 = jnp.dot(x, w1_ref[...], preferred_element_type=jnp.float32)
    h2 = jnp.dot(x, w2_ref[...], preferred_element_type=jnp.float32)
    gated = (h1 * jax.nn.sigmoid(h1)) * h2
    o_ref[...] += jnp.dot(gated.astype(x.dtype), w3_ref[...],
                          preferred_element_type=jnp.float32)


@functools.partial(jax.jit, static_argnames=("tile_m", "tile_h"))
def feed_forward(x, w1t, w2t, w3t, *, tile_m=None, tile_h=None):
    """out = fc3(silu(fc1(x)) * fc2(x)).

    x: [batch, seq, emb]; w1t/w2t: [emb, hid]; w3t: [hid, emb].
    """
    batch, seq, emb = x.shape
    hid = w1t.shape[1]
    M = batch * seq
    dtype = x.dtype
    itemsize = jnp.dtype(dtype).itemsize

    gen = _tpu_generation()
    vmem_cap = _vmem_capacity_bytes(gen)
    usable = vmem_cap - max(8 << 20, vmem_cap // 8)     # headroom for compiler

    use_acc = dtype != jnp.float32
    tile_m, tile_h, vmem_need = _select_tiles(
        gen, M, emb, hid, itemsize, use_acc, usable, tile_m, tile_h)

    M_pad = _round_up(M, tile_m)
    hid_pad = _round_up(hid, tile_h)
    nh = hid_pad // tile_h
    n_i = M_pad // tile_m

    # Pad ragged M with zero rows (sliced off afterwards).
    x2d = x.reshape(M, emb)
    if M_pad != M:
        x2d = jnp.pad(x2d, ((0, M_pad - M), (0, 0)))

    # Hidden-dim padding only touches HBM when hid is not a multiple of tile_h.
    # Padded columns/rows contribute zero through the SiLU gate.
    # For production shapes, pre-pad the weights once at parameter-load time.
    if hid_pad != hid:
        w1t = jnp.pad(w1t, ((0, 0), (0, hid_pad - hid)))
        w2t = jnp.pad(w2t, ((0, 0), (0, hid_pad - hid)))
        w3t = jnp.pad(w3t, ((0, hid_pad - hid), (0, 0)))

    grid = (n_i, nh)

    vmem_limit = int(min(vmem_cap - (2 << 20),
                         max(vmem_need + (8 << 20), 32 << 20)))

    flops = 6 * M_pad * emb * hid_pad
    bytes_accessed = (2 * M_pad * emb * itemsize              # x in + out
                      + n_i * 3 * emb * hid_pad * itemsize)   # streamed weights
    cost = pl.CostEstimate(flops=flops, transcendentals=M_pad * hid_pad,
                           bytes_accessed=bytes_accessed)

    kernel = _ffn_kernel_acc if use_acc else _ffn_kernel_f32
    scratch = [pltpu.VMEM((tile_m, emb), jnp.float32)] if use_acc else []

    out2d = pl.pallas_call(
        kernel,
        out_shape=jax.ShapeDtypeStruct((M_pad, emb), dtype),
        grid_spec=pltpu.PrefetchScalarGridSpec(
            num_scalar_prefetch=0,
            grid=grid,
            in_specs=[
                # x rows: resident across the hidden reduction -> 1 buffer.
                _spec((tile_m, emb), lambda i, j: (i, 0), buffer_count=1),
                # Streamed weight tiles (double-buffered by default).
                _spec((emb, tile_h), lambda i, j: (0, j)),   # w1 tile
                _spec((emb, tile_h), lambda i, j: (0, j)),   # w2 tile
                _spec((tile_h, emb), lambda i, j: (j, 0)),   # w3 tile
            ],
            # Output tile resident across j -> 1 buffer.
            out_specs=_spec((tile_m, emb), lambda i, j: (i, 0), buffer_count=1),
            scratch_shapes=scratch,
        ),
        compiler_params=pltpu.CompilerParams(
            # TODO(synk): on v7x verify "parallel" shards the row axis across
            # both TensorCores; otherwise switch to pltpu.CORE_PARALLEL with
            # per-core partial accumulators.
            dimension_semantics=("parallel", "arbitrary"),
            vmem_limit_bytes=vmem_limit,
        ),
        cost_estimate=cost,
    )(x2d, w1t, w2t, w3t)

    return out2d[:M].reshape(batch, seq, emb)


def _reference(x, w1t, w2t, w3t):
    h1 = jnp.einsum("bse,eh->bsh", x, w1t).astype(jnp.float32)
    h2 = jnp.einsum("bse,eh->bsh", x, w2t).astype(jnp.float32)
    g = (h1 * jax.nn.sigmoid(h1)) * h2
    return jnp.einsum("bsh,he->bse", g.astype(x.dtype), w3t).astype(x.dtype)


def _make_params(key, emb_dim, hidden_dim, dtype):
    k1, k2, k3 = jax.random.split(key, 3)
    w1t = (jax.random.normal(k1, (emb_dim, hidden_dim), dtype=jnp.float32)
           / jnp.sqrt(emb_dim)).astype(dtype)
    w2t = (jax.random.normal(k2, (emb_dim, hidden_dim), dtype=jnp.float32)
           / jnp.sqrt(emb_dim)).astype(dtype)
    w3t = (jax.random.normal(k3, (hidden_dim, emb_dim), dtype=jnp.float32)
           / jnp.sqrt(hidden_dim)).astype(dtype)
    return w1t, w2t, w3t


if __name__ == "__main__":
    key = jax.random.PRNGKey(0)
    kx1, kw1, kx2, kw2, kx3, kw3 = jax.random.split(key, 6)

    # Test 1: f32, aligned shapes, small explicit tiles so both grid axes step.
    batch, seq, emb_dim, hidden_dim = 2, 64, 128, 256
    x = jax.random.normal(kx1, (batch, seq, emb_dim), dtype=jnp.float32)
    w1t, w2t, w3t = _make_params(kw1, emb_dim, hidden_dim, jnp.float32)
    out = jax.block_until_ready(
        feed_forward(x, w1t, w2t, w3t, tile_m=64, tile_h=128))
    ref = _reference(x, w1t, w2t, w3t)
    assert out.shape == (batch, seq, emb_dim)
    assert jnp.allclose(out, ref, atol=1e-3, rtol=1e-3), "mismatch (f32 aligned)"

    # Test 2: f32, ragged M and hidden dims, automatic tile selection.
    b2, s2, e2, h2 = 2, 37, 128, 200
    x2 = jax.random.normal(kx2, (b2, s2, e2), dtype=jnp.float32)
    w1b, w2b, w3b = _make_params(kw2, e2, h2, jnp.float32)
    out2 = jax.block_until_ready(feed_forward(x2, w1b, w2b, w3b))
    ref2 = _reference(x2, w1b, w2b, w3b)
    assert out2.shape == (b2, s2, e2)
    assert jnp.allclose(out2, ref2, atol=1e-3, rtol=1e-3), "mismatch (f32 ragged)"

    # Test 3: bf16, exercises the f32-scratch accumulator path.
    b3, s3, e3, h3 = 2, 32, 128, 256
    x3 = jax.random.normal(kx3, (b3, s3, e3), dtype=jnp.float32).astype(jnp.bfloat16)
    w1c, w2c, w3c = _make_params(kw3, e3, h3, jnp.bfloat16)
    out3 = jax.block_until_ready(
        feed_forward(x3, w1c, w2c, w3c, tile_m=32, tile_h=128))
    ref3 = _reference(x3, w1c, w2c, w3c)
    assert out3.shape == (b3, s3, e3)
    assert jnp.allclose(out3.astype(jnp.float32), ref3.astype(jnp.float32),
                        atol=5e-2, rtol=5e-2), "mismatch (bf16)"

    print("KERNEL_OK")
</pallas_src>

<mosaic_0001>
module attributes {stable_mosaic.version = 11 : i64} {
  func.func @_ffn_kernel_f32(%arg0: i32, %arg1: i32, %arg2: memref<64x128xf32, #tpu.memory_space<vmem>>, %arg3: memref<128x128xf32, #tpu.memory_space<vmem>>, %arg4: memref<128x128xf32, #tpu.memory_space<vmem>>, %arg5: memref<128x128xf32, #tpu.memory_space<vmem>>, %arg6: memref<64x128xf32, #tpu.memory_space<vmem>>) attributes {dimension_semantics = [#tpu.dimension_semantics<parallel>, #tpu.dimension_semantics<arbitrary>], iteration_bounds = array<i64: 2, 2>, scalar_prefetch = 0 : i64, scratch_operands = 0 : i64, tpu.core_type = #tpu.core_type<tc>, window_params = [{pipeline_mode = #tpu.pipeline_mode<synchronous>, transform_indices = @transform_0, window_bounds = array<i64: 64, 128>}, {transform_indices = @transform_1, window_bounds = array<i64: 128, 128>}, {transform_indices = @transform_2, window_bounds = array<i64: 128, 128>}, {transform_indices = @transform_3, window_bounds = array<i64: 128, 128>}, {pipeline_mode = #tpu.pipeline_mode<synchronous>, transform_indices = @transform_4, window_bounds = array<i64: 64, 128>}]} {
    %c0_i32 = arith.constant 0 : i32
    %0 = arith.cmpi eq, %arg1, %c0_i32 : i32
    %1 = arith.extui %0 : i1 to i32
    %c0_i32_0 = arith.constant 0 : i32
    %2 = arith.cmpi ne, %1, %c0_i32_0 : i32
    scf.if %2 {
      %cst_15 = arith.constant 0.000000e+00 : f32
      %20 = vector.broadcast %cst_15 : f32 to vector<64x128xf32>
      %c0_16 = arith.constant 0 : index
      %c0_17 = arith.constant 0 : index
      %21 = vector.load %arg6[%c0_16, %c0_17] : memref<64x128xf32, #tpu.memory_space<vmem>>, vector<64x128xf32>
      tpu.vector_store %arg6[%c0_16, %c0_17], %20 {strides = array<i32>} : memref<64x128xf32, #tpu.memory_space<vmem>>, vector<64x128xf32>,
    } else {
    }
    %c0 = arith.constant 0 : index
    %c0_1 = arith.constant 0 : index
    %3 = vector.load %arg2[%c0, %c0_1] : memref<64x128xf32, #tpu.memory_space<vmem>>, vector<64x128xf32>
    %c0_2 = arith.constant 0 : index
    %c0_3 = arith.constant 0 : index
    %4 = vector.load %arg3[%c0_2, %c0_3] : memref<128x128xf32, #tpu.memory_space<vmem>>, vector<128x128xf32>
    %cst = arith.constant dense<0.000000e+00> : vector<64x128xf32>
    %5 = tpu.matmul %3, %4, %cst {dimension_numbers = #tpu.dot_dimension_numbers<[1], [0], [0], [1], [0, 0, 1, 1], [], []>} : vector<64x128xf32>, vector<128x128xf32>, vector<64x128xf32> -> vector<64x128xf32>
    %c0_4 = arith.constant 0 : index
    %c0_5 = arith.constant 0 : index
    %6 = vector.load %arg4[%c0_4, %c0_5] : memref<128x128xf32, #tpu.memory_space<vmem>>, vector<128x128xf32>
    %cst_6 = arith.constant dense<0.000000e+00> : vector<64x128xf32>
    %7 = tpu.matmul %3, %6, %cst_6 {dimension_numbers = #tpu.dot_dimension_numbers<[1], [0], [0], [1], [0, 0, 1, 1], [], []>} : vector<64x128xf32>, vector<128x128xf32>, vector<64x128xf32> -> vector<64x128xf32>
    %8 = arith.negf %5 : vector<64x128xf32>
    %9 = math.exp %8 : vector<64x128xf32>
    %cst_7 = arith.constant 1.000000e+00 : f32
    %10 = vector.broadcast %cst_7 : f32 to vector<64x128xf32>
    %11 = arith.addf %10, %9 : vector<64x128xf32>
    %12 = arith.divf %10, %11 : vector<64x128xf32>
    %13 = arith.mulf %5, %12 : vector<64x128xf32>
    %14 = arith.mulf %13, %7 : vector<64x128xf32>
    %c0_8 = arith.constant 0 : index
    %c0_9 = arith.constant 0 : index
    %15 = vector.load %arg6[%c0_8, %c0_9] : memref<64x128xf32, #tpu.memory_space<vmem>>, vector<64x128xf32>
    %c0_10 = arith.constant 0 : index
    %c0_11 = arith.constant 0 : index
    %16 = vector.load %arg5[%c0_10, %c0_11] : memref<128x128xf32, #tpu.memory_space<vmem>>, vector<128x128xf32>
    %cst_12 = arith.constant dense<0.000000e+00> : vector<64x128xf32>
    %17 = tpu.matmul %14, %16, %cst_12 {dimension_numbers = #tpu.dot_dimension_numbers<[1], [0], [0], [1], [0, 0, 1, 1], [], []>} : vector<64x128xf32>, vector<128x128xf32>, vector<64x128xf32> -> vector<64x128xf32>
    %18 = arith.addf %15, %17 : vector<64x128xf32>
    %c0_13 = arith.constant 0 : index
    %c0_14 = arith.constant 0 : index
    %19 = vector.load %arg6[%c0_13, %c0_14] : memref<64x128xf32, #tpu.memory_space<vmem>>, vector<64x128xf32>
    tpu.vector_store %arg6[%c0_13, %c0_14], %18 {strides = array<i32>} : memref<64x128xf32, #tpu.memory_space<vmem>>, vector<64x128xf32>,
    return
  }
  func.func @transform_0(%arg0: i32, %arg1: i32) -> (i32, i32) {
    %c0_i32 = arith.constant 0 : i32
    %c0_i32_0 = arith.constant 0 : i32
    return %arg0, %c0_i32 : i32, i32
  }
  func.func @transform_1(%arg0: i32, %arg1: i32) -> (i32, i32) {
    %c0_i32 = arith.constant 0 : i32
    %c0_i32_0 = arith.constant 0 : i32
    return %c0_i32, %arg1 : i32, i32
  }
  func.func @transform_2(%arg0: i32, %arg1: i32) -> (i32, i32) {
    %c0_i32 = arith.constant 0 : i32
    %c0_i32_0 = arith.constant 0 : i32
    return %c0_i32, %arg1 : i32, i32
  }
  func.func @transform_3(%arg0: i32, %arg1: i32) -> (i32, i32) {
    %c0_i32 = arith.constant 0 : i32
    %c0_i32_0 = arith.constant 0 : i32
    return %arg1, %c0_i32 : i32, i32
  }
  func.func @transform_4(%arg0: i32, %arg1: i32) -> (i32, i32) {
    %c0_i32 = arith.constant 0 : i32
    %c0_i32_0 = arith.constant 0 : i32
    return %arg0, %c0_i32 : i32, i32
  }
}

</mosaic_0001>

<llo_original>
// kernel: feed_forward.1
$region0: #{feed_forward.1}
  #allocation0 [shape = 'u32[]', space=smem, size = 0x4, offset = 0x4, fixed_abs, tag = 'smem constant byte address 0x4 - core index']
  #allocation1 [shape = 'u32[144,128]{1,0:T(1,128)}', space=vmem, size = 0x12000, scoped, tag = 'internal scratch']
  %s0 = inlined_call_operand.hbm [shape: f32[128,128], index: 0, kind: input, shape index: {}]
  %s1 = inlined_call_operand.hbm [shape: f32[128,256], index: 1, kind: input, shape index: {}]
  %s2 = inlined_call_operand.hbm [shape: f32[128,256], index: 2, kind: input, shape index: {}]
  %s3 = inlined_call_operand.hbm [shape: f32[256,128], index: 3, kind: input, shape index: {}]
  %s4 = inlined_call_operand.hbm [shape: f32[128,128], index: 4, kind: output, shape index: {}]
  %s5 = sld [smem:[#allocation0]]
  $region69: #{feed_forward.1} parent=0
    _
  %s7 = ssub.s32 1, %s5
  %s8 = scalar_select 0, %s7, %s5
  $region1: #{feed_forward.1} parent=0
    #allocation2 [shape = 'u8[32768]{0}', space=vmem, size = 0x8000, scoped, tag = 'input window, operand 0, single buffered']
    #allocation3 [shape = 's32[2]{0}', space=sflag, size = 0x8, scoped, tag = 'scoped memory for feed_forward.1']
    #allocation4 [shape = 's32[2]{0}', space=sflag, size = 0x8, scoped, tag = 'scoped memory for feed_forward.1']
    #allocation5 [shape = 'u8[131072]{0}', space=vmem, size = 0x20000, scoped, tag = 'input window, operand 1']
    #allocation6 [shape = 's32[2]{0}', space=sflag, size = 0x8, scoped, tag = 'scoped memory for feed_forward.1']
    #allocation7 [shape = 'u8[131072]{0}', space=vmem, size = 0x20000, scoped, tag = 'input window, operand 2']
    #allocation8 [shape = 'u8[131072]{0}', space=vmem, size = 0x20000, scoped, tag = 'input window, operand 3']
    #allocation9 [shape = 's32[2]{0}', space=sflag, size = 0x8, scoped, tag = 'scoped memory for feed_forward.1']
    #allocation10 [shape = 'u8[32768]{0}', space=vmem, size = 0x8000, scoped, tag = 'output window, operand 0, single buffered']
    %9 = vsyncpa [#allocation3], 0
    %10 = vsyncpa [#allocation6], 0
    %s11 = scalar_lea.sflag [#allocation6], 1
    %12 = vsyncpa %s11, 0
    %13 = vsyncpa [#allocation9], 0
    %s14 = scalar_lea.sflag [#allocation9], 1
    %15 = vsyncpa %s14, 0
    %16 = vsyncpa [#allocation4], 0
    loop: start=0, step=1, limit=6
    $region2: #{feed_forward.1} parent=1 // loop_pre_header
      _
    $region3: #{feed_forward.1} parent=1 // loop_header
      %s18 = sphi 0, %s22
      %p19 = scmp.ge.s32.totalorder %s18, 6
      %s25 = sphi 0, %s37
      %s26 = sphi 0, %s33
      %s27 = sphi 0, %s25
      %s28 = sphi 0, %s26
      %s29 = sphi 0, %s27
      %s30 = sphi 0, %s28
      %s40 = sphi 0, %s42
      %s43 = sphi 0, %s40
      %s44 = sphi 0, %s43
      %s60 = sphi 0, %s44
      %s66 = sphi 0, %s68
      %s69 = sphi 0, %s66
      %s70 = sphi 0, %s69
      %s86 = sphi 0, %s70
      %s92 = sphi 0, %s94
      %s95 = sphi 0, %s92
      %s96 = sphi 0, %s95
      %s112 = sphi 0, %s96
      %s118 = sphi 0, %s120
      %s121 = sphi 0, %s118
      %s122 = sphi 0, %s121
      %s138 = sphi 0, %s122
      %s144 = sphi 0, %s146
      %s147 = sphi 0, %s144
      %s148 = sphi 0, %s147
      %s164 = sphi 0, %s148
    $region4: #{feed_forward.1} parent=1 // loop_header_branch
      %21 = sbr.rel (%p19) target = $region8
    $region5: #{feed_forward.1} parent=1 // loop_body
      %s23 = ssub.s32 %s18, 1
      %s24 = ssub.s32 %s18, 2
      %s31 = sadd.s32 1, %s26
      %p32 = scmp.ge.s32.totalorder %s31, 2
      %s33 = scalar_select %p32, 0, %s31
      %s34 = sadd.s32 1, %s25
      %s35 = scalar_select %p32, %s34, %s25
      %p36 = scmp.ge.s32.totalorder %s35, 2
      %s37 = scalar_select %p36, 0, %s35
      %s38 = ssub.s32 %s25, %s37
      %p39 = scmp.eq.s32.totalorder %s38, 0
      %s41 = sadd.s32 %s40, 1
      %s42 = scalar_select %p39, %s40, %s41
      %p45 = pneg %p39
      %p46 = scmp.eq.s32.totalorder %s18, 3
      %p47 = por %p45, %p46
      %p48 = scmp.ne.s32.totalorder %s40, %s43
      %p49 = scmp.eq.s32.totalorder %s18, 0
      %p50 = por %p48, %p49
      %p51 = scmp.ne.s32.totalorder %s40, %s43
      %p52 = scmp.eq.s32.totalorder %s23, 3
      %p53 = por %p51, %p52
      %p54 = scmp.ne.s32.totalorder %s43, %s44
      %p55 = scmp.eq.s32.totalorder %s23, 0
      %p56 = por %p54, %p55
      %p57 = scmp.ne.s32.totalorder %s43, %s44
      %p58 = scmp.eq.s32.totalorder %s24, 3
      %p59 = por %p57, %p58
      %p61 = scmp.ne.s32.totalorder %s44, %s60
      %p62 = scmp.eq.s32.totalorder %s24, 0
      %p63 = por %p61, %p62
      %s64 = ssub.s32 %s26, %s33
      %p65 = scmp.eq.s32.totalorder %s64, 0
      %s67 = sadd.s32 %s66, 1
      %s68 = scalar_select %p65, %s66, %s67
      %p71 = pneg %p65
      %p72 = scmp.eq.s32.totalorder %s18, 3
      %p73 = por %p71, %p72
      %p74 = scmp.ne.s32.totalorder %s66, %s69
      %p75 = scmp.eq.s32.totalorder %s18, 0
      %p76 = por %p74, %p75
      %p77 = scmp.ne.s32.totalorder %s66, %s69
      %p78 = scmp.eq.s32.totalorder %s23, 3
      %p79 = por %p77, %p78
      %p80 = scmp.ne.s32.totalorder %s69, %s70
      %p81 = scmp.eq.s32.totalorder %s23, 0
      %p82 = por %p80, %p81
      %p83 = scmp.ne.s32.totalorder %s69, %s70
      %p84 = scmp.eq.s32.totalorder %s24, 3
      %p85 = por %p83, %p84
      %p87 = scmp.ne.s32.totalorder %s70, %s86
      %p88 = scmp.eq.s32.totalorder %s24, 0
      %p89 = por %p87, %p88
      %s90 = ssub.s32 %s26, %s33
      %p91 = scmp.eq.s32.totalorder %s90, 0
      %s93 = sadd.s32 %s92, 1
      %s94 = scalar_select %p91, %s92, %s93
      %p97 = pneg %p91
      %p98 = scmp.eq.s32.totalorder %s18, 3
      %p99 = por %p97, %p98
      %p100 = scmp.ne.s32.totalorder %s92, %s95
      %p101 = scmp.eq.s32.totalorder %s18, 0
      %p102 = por %p100, %p101
      %p103 = scmp.ne.s32.totalorder %s92, %s95
      %p104 = scmp.eq.s32.totalorder %s23, 3
      %p105 = por %p103, %p104
      %p106 = scmp.ne.s32.totalorder %s95, %s96
      %p107 = scmp.eq.s32.totalorder %s23, 0
      %p108 = por %p106, %p107
      %p109 = scmp.ne.s32.totalorder %s95, %s96
      %p110 = scmp.eq.s32.totalorder %s24, 3
      %p111 = por %p109, %p110
      %p113 = scmp.ne.s32.totalorder %s96, %s112
      %p114 = scmp.eq.s32.totalorder %s24, 0
      %p115 = por %p113, %p114
      %s116 = ssub.s32 %s26, %s33
      %p117 = scmp.eq.s32.totalorder %s116, 0
      %s119 = sadd.s32 %s118, 1
      %s120 = scalar_select %p117, %s118, %s119
      %p123 = pneg %p117
      %p124 = scmp.eq.s32.totalorder %s18, 3
      %p125 = por %p123, %p124
      %p126 = scmp.ne.s32.totalorder %s118, %s121
      %p127 = scmp.eq.s32.totalorder %s18, 0
      %p128 = por %p126, %p127
      %p129 = scmp.ne.s32.totalorder %s118, %s121
      %p130 = scmp.eq.s32.totalorder %s23, 3
      %p131 = por %p129, %p130
      %p132 = scmp.ne.s32.totalorder %s121, %s122
      %p133 = scmp.eq.s32.totalorder %s23, 0
      %p134 = por %p132, %p133
      %p135 = scmp.ne.s32.totalorder %s121, %s122
      %p136 = scmp.eq.s32.totalorder %s24, 3
      %p137 = por %p135, %p136
      %p139 = scmp.ne.s32.totalorder %s122, %s138
      %p140 = scmp.eq.s32.totalorder %s24, 0
      %p141 = por %p139, %p140
      %s142 = ssub.s32 %s25, %s37
      %p143 = scmp.eq.s32.totalorder %s142, 0
      %s145 = sadd.s32 %s144, 1
      %s146 = scalar_select %p143, %s144, %s145
      %p149 = pneg %p143
      %p150 = scmp.eq.s32.totalorder %s18, 3
      %p151 = por %p149, %p150
      %p152 = scmp.ne.s32.totalorder %s144, %s147
      %p153 = scmp.eq.s32.totalorder %s18, 0
      %p154 = por %p152, %p153
      %p155 = scmp.ne.s32.totalorder %s144, %s147
      %p156 = scmp.eq.s32.totalorder %s23, 3
      %p157 = por %p155, %p156
      %p158 = scmp.ne.s32.totalorder %s147, %s148
      %p159 = scmp.eq.s32.totalorder %s23, 0
      %p160 = por %p158, %p159
      %p161 = scmp.ne.s32.totalorder %s147, %s148
      %p162 = scmp.eq.s32.totalorder %s24, 3
      %p163 = por %p161, %p162
      %p165 = scmp.ne.s32.totalorder %s148, %s164
      %p166 = scmp.eq.s32.totalorder %s24, 0
      %p167 = por %p165, %p166
      %p168 = scmp.le.s32.totalorder 1, %s18
      %p169 = scmp.lt.s32.totalorder %s18, 5
      %p170 = pnand %p168, %p169
      %p171 = pneg %p170
      // Predicated region
      $region9: #{feed_forward.1} parent=5 // pred_check
        _
      $region10: #{feed_forward.1} parent=5 // pred_check_branch
        %173 = sbr.rel (%p170) target = $region12
      $region11: #{feed_forward.1} parent=5 // pred_region
        %s174 = ssub.s32 %s18, 1
        // Predicated region
        $region13: #{feed_forward.1} parent=11 // pred_check
          %p175 = pneg %p56
        $region14: #{feed_forward.1} parent=11 // pred_check_branch
          %177 = sbr.rel (%p175) target = $region16
        $region15: #{feed_forward.1} parent=11 // pred_region
          %s178 = smul.u32 8, %s27
          %s180 = ssub.s32 1024, 1024
          %181 = vsyncadd [#allocation3], %s180
          %s182 = smul.addr %s178, 128
          %s183 = scalar_lea.hbm %s0, %s182
          %s184 = sshll.u32 [#allocation2], 4
          %s185 = int_to_ptr.vmem [resolvable:$true] %s184
          %190 = dma.hbm_to_vmem [thread:$0]  %s183, 1024, %s185, [#allocation3], 128, 128, 8
        $region16: #{feed_forward.1} parent=11 // pred_fallthru
          _
      $region12: #{feed_forward.1} parent=5 // pred_fallthru
        _
      %p191 = scmp.lt.s32.totalorder %s18, 4
      // Predicated region
      $region17: #{feed_forward.1} parent=5 // pred_check
        %p192 = pneg %p191
      $region18: #{feed_forward.1} parent=5 // pred_check_branch
        %194 = sbr.rel (%p192) target = $region20
      $region19: #{feed_forward.1} parent=5 // pred_region
        // Predicated region
        $region21: #{feed_forward.1} parent=19 // pred_check
          %p195 = pneg %p76
        $region22: #{feed_forward.1} parent=19 // pred_check_branch
          %197 = sbr.rel (%p195) target = $region24
        $region23: #{feed_forward.1} parent=19 // pred_region
          %s198 = sand.u32 %s18, 1
          %s199 = scalar_lea.sflag [#allocation6], %s198
          %s200 = sand.u32 %s66, 1
          %s201 = smul.addr %s200, 128
          %s202 = scalar_lea.vmem [#allocation5], %s201
          %s204 = ssub.s32 2048, 2048
          %205 = vsyncadd %s199, %s204
          %s206 = smul.addr %s26, 128
          %s207 = scalar_lea.hbm %s1, %s206
          %s208 = sshll.u32 %s202, 4
          %s209 = int_to_ptr.vmem [resolvable:$true] %s208
          %214 = dma.hbm_to_vmem [thread:$0]  %s207, 2048, %s209, %s199, 256, 128, 8
        $region24: #{feed_forward.1} parent=19 // pred_fallthru
          _
        // Predicated region
        $region25: #{feed_forward.1} parent=19 // pred_check
          %p215 = pneg %p102
        $region26: #{feed_forward.1} parent=19 // pred_check_branch
          %217 = sbr.rel (%p215) target = $region28
        $region27: #{feed_forward.1} parent=19 // pred_region
          %s218 = sand.u32 %s18, 1
          %s219 = scalar_lea.sflag [#allocation6], %s218
          %s220 = sand.u32 %s92, 1
          %s221 = smul.addr %s220, 128
          %s222 = scalar_lea.vmem [#allocation7], %s221
          %s224 = ssub.s32 2048, 2048
          %225 = vsyncadd %s219, %s224
          %s226 = smul.addr %s26, 128
          %s227 = scalar_lea.hbm %s2, %s226
          %s228 = sshll.u32 %s222, 4
          %s229 = int_to_ptr.vmem [resolvable:$true] %s228
          %234 = dma.hbm_to_vmem [thread:$0]  %s227, 2048, %s229, %s219, 256, 128, 8
        $region28: #{feed_forward.1} parent=19 // pred_fallthru
          _
        // Predicated region
        $region29: #{feed_forward.1} parent=19 // pred_check
          %p235 = pneg %p128
        $region30: #{feed_forward.1} parent=19 // pred_check_branch
          %237 = sbr.rel (%p235) target = $region32
        $region31: #{feed_forward.1} parent=19 // pred_region
          %s238 = sand.u32 %s118, 1
          %s239 = scalar_lea.sflag [#allocation9], %s238
          %s240 = sand.u32 %s118, 1
          %s241 = smul.addr %s240, 128
          %s242 = scalar_lea.vmem [#allocation8], %s241
          %s243 = smul.u32 16, %s26
          %s245 = ssub.s32 2048, 2048
          %246 = vsyncadd %s239, %s245
          %s247 = smul.addr %s243, 128
          %s248 = scalar_lea.hbm %s3, %s247
          %s249 = sshll.u32 %s242, 4
          %s250 = int_to_ptr.vmem [resolvable:$true] %s249
          %255 = dma.hbm_to_vmem [thread:$0]  %s248, 2048, %s250, %s239, 128, 128, 8
        $region32: #{feed_forward.1} parent=19 // pred_fallthru
          _
      $region20: #{feed_forward.1} parent=5 // pred_fallthru
        _
      %p256 = scmp.le.s32.totalorder 1, %s18
      %p257 = scmp.lt.s32.totalorder %s18, 5
      %p258 = pnand %p256, %p257
      %p259 = pneg %p258
      // Predicated region
      $region33: #{feed_forward.1} parent=5 // pred_check
        _
      $region34: #{feed_forward.1} parent=5 // pred_check_branch
        %261 = sbr.rel (%p258) target = $region36
      $region35: #{feed_forward.1} parent=5 // pred_region
        %s262 = ssub.s32 %s18, 1
        // Predicated region
        $region37: #{feed_forward.1} parent=35 // pred_check
          %p263 = pneg %p56
        $region38: #{feed_forward.1} parent=35 // pred_check_branch
          %265 = sbr.rel (%p263) target = $region40
        $region39: #{feed_forward.1} parent=35 // pred_region
          %266 = dma.done [#allocation3], 1024
        $region40: #{feed_forward.1} parent=35 // pred_fallthru
          _
        %s267 = sand.u32 %s23, 1
        %s268 = scalar_lea.sflag [#allocation6], %s267
        %s269 = sand.u32 %s69, 1
        %s270 = smul.addr %s269, 128
        %s271 = scalar_lea.vmem [#allocation5], %s270
        // Predicated region
        $region41: #{feed_forward.1} parent=35 // pred_check
          %p272 = pneg %p82
        $region42: #{feed_forward.1} parent=35 // pred_check_branch
          %274 = sbr.rel (%p272) target = $region44
        $region43: #{feed_forward.1} parent=35 // pred_region
          %275 = dma.done %s268, 2048
        $region44: #{feed_forward.1} parent=35 // pred_fallthru
          _
        %s276 = sand.u32 %s23, 1
        %s277 = scalar_lea.sflag [#allocation6], %s276
        %s278 = sand.u32 %s95, 1
        %s279 = smul.addr %s278, 128
        %s280 = scalar_lea.vmem [#allocation7], %s279
        // Predicated region
        $region45: #{feed_forward.1} parent=35 // pred_check
          %p281 = pneg %p108
        $region46: #{feed_forward.1} parent=35 // pred_check_branch
          %283 = sbr.rel (%p281) target = $region48
        $region47: #{feed_forward.1} parent=35 // pred_region
          %284 = dma.done %s277, 2048
        $region48: #{feed_forward.1} parent=35 // pred_fallthru
          _
        %s285 = sand.u32 %s121, 1
        %s286 = scalar_lea.sflag [#allocation9], %s285
        %s287 = sand.u32 %s121, 1
        %s288 = smul.addr %s287, 128
        %s289 = scalar_lea.vmem [#allocation8], %s288
        // Predicated region
        $region49: #{feed_forward.1} parent=35 // pred_check
          %p290 = pneg %p134
        $region50: #{feed_forward.1} parent=35 // pred_check_branch
          %292 = sbr.rel (%p290) target = $region52
        $region51: #{feed_forward.1} parent=35 // pred_region
          %293 = dma.done %s286, 2048
        $region52: #{feed_forward.1} parent=35 // pred_fallthru
          _
        %p294 = pneg %p56
        %p295 = pneg %p53
        %s296 = sand.u32 %s23, 1
        %s297 = scalar_lea.sflag [#allocation6], %s296
        %s298 = sand.u32 %s69, 1
        %s299 = smul.addr %s298, 128
        %s300 = scalar_lea.vmem [#allocation5], %s299
        %p301 = pneg %p82
        %p302 = pneg %p79
        %s303 = sand.u32 %s23, 1
        %s304 = scalar_lea.sflag [#allocation6], %s303
        %s305 = sand.u32 %s95, 1
        %s306 = smul.addr %s305, 128
        %s307 = scalar_lea.vmem [#allocation7], %s306
        %p308 = pneg %p108
        %p309 = pneg %p105
        %s310 = sand.u32 %s121, 1
        %s311 = scalar_lea.sflag [#allocation9], %s310
        %s312 = sand.u32 %s121, 1
        %s313 = smul.addr %s312, 128
        %s314 = scalar_lea.vmem [#allocation8], %s313
        %p315 = pneg %p134
        %p316 = pneg %p131
        %p317 = pneg %p160
        %p318 = pneg %p157
        %s319 = smul.u32 8, %s27
        %s320 = smul.u32 16, %s28
        %s321 = smul.u32 8, %s27
        %p322 = scmp.eq.s32.totalorder %s28, 0
        // Predicated region
        $region53: #{feed_forward.1} parent=35 // pred_check
          %p323 = pneg %p322
        $region54: #{feed_forward.1} parent=35 // pred_check_branch
          %325 = sbr.rel (%p323) target = $region56
        $region55: #{feed_forward.1} parent=35 // pred_region
          %326 = vst [vmem:[#allocation10] sm:$0xff] 0.0
          %327 = vst [vmem:[#allocation10 + $0x8] sm:$0xff] 0.0
          %328 = vst [vmem:[#allocation10 + $0x10] sm:$0xff] 0.0
          %329 = vst [vmem:[#allocation10 + $0x18] sm:$0xff] 0.0
          %330 = vst [vmem:[#allocation10 + $0x20] sm:$0xff] 0.0
          %331 = vst [vmem:[#allocation10 + $0x28] sm:$0xff] 0.0
          %332 = vst [vmem:[#allocation10 + $0x30] sm:$0xff] 0.0
          %333 = vst [vmem:[#allocation10 + $0x38] sm:$0xff] 0.0
        $region56: #{feed_forward.1} parent=35 // pred_fallthru
          _
        %v334 = vld [vmem:[#allocation2] sm:$0xff]
        %v335 = vld [vmem:[#allocation2 + $0x8] sm:$0xff]
        %v336 = vld [vmem:[#allocation2 + $0x10] sm:$0xff]
        %v337 = vld [vmem:[#allocation2 + $0x18] sm:$0xff]
        %v338 = vld [vmem:[#allocation2 + $0x20] sm:$0xff]
        %v339 = vld [vmem:[#allocation2 + $0x28] sm:$0xff]
        %v340 = vld [vmem:[#allocation2 + $0x30] sm:$0xff]
        %v341 = vld [vmem:[#allocation2 + $0x38] sm:$0xff]
        %v342 = vld [vmem:[%s271] sm:$0xff]
        %v343 = vld [vmem:[%s271 + $0x8] sm:$0xff]
        %v344 = vld [vmem:[%s271 + $0x10] sm:$0xff]
        %v345 = vld [vmem:[%s271 + $0x18] sm:$0xff]
        %v346 = vld [vmem:[%s271 + $0x20] sm:$0xff]
        %v347 = vld [vmem:[%s271 + $0x28] sm:$0xff]
        %v348 = vld [vmem:[%s271 + $0x30] sm:$0xff]
        %v349 = vld [vmem:[%s271 + $0x38] sm:$0xff]
        %v350 = vld [vmem:[%s271 + $0x40] sm:$0xff]
        %v351 = vld [vmem:[%s271 + $0x48] sm:$0xff]
        %v352 = vld [vmem:[%s271 + $0x50] sm:$0xff]
        %v353 = vld [vmem:[%s271 + $0x58] sm:$0xff]
        %v354 = vld [vmem:[%s271 + $0x60] sm:$0xff]
        %v355 = vld [vmem:[%s271 + $0x68] sm:$0xff]
        %v356 = vld [vmem:[%s271 + $0x70] sm:$0xff]
        %v357 = vld [vmem:[%s271 + $0x78] sm:$0xff]
        %358 = vmatprep.subr.mxu0 0.0
        %359 = vmatpush1.msra.mxu0 %v342
        %360 = vmatprep.subr.mxu0 0.0
        %361 = vmatpush1.msra.mxu0 %v343
        %362 = vmatprep.subr.mxu0 0.0
        %363 = vmatpush1.msra.mxu0 %v344
        %364 = vmatprep.subr.mxu0 0.0
        %365 = vmatpush1.msra.mxu0 %v345
        %366 = vmatprep.subr.mxu0 0.0
        %367 = vmatpush1.msra.mxu0 %v346
        %368 = vmatprep.subr.mxu0 0.0
        %369 = vmatpush1.msra.mxu0 %v347
        %370 = vmatprep.subr.mxu0 0.0
        %371 = vmatpush1.msra.mxu0 %v348
        %372 = vmatprep.subr.mxu0 0.0
        %373 = vmatpush1.msra.mxu0 %v349
        %374 = vmatprep.subr.mxu0 0.0
        %375 = vmatpush1.msra.mxu0 %v350
        %376 = vmatprep.subr.mxu0 0.0
        %377 = vmatpush1.msra.mxu0 %v351
        %378 = vmatprep.subr.mxu0 0.0
        %379 = vmatpush1.msra.mxu0 %v352
        %380 = vmatprep.subr.mxu0 0.0
        %381 = vmatpush1.msra.mxu0 %v353
        %382 = vmatprep.subr.mxu0 0.0
        %383 = vmatpush1.msra.mxu0 %v354
        %384 = vmatprep.subr.mxu0 0.0
        %385 = vmatpush1.msra.mxu0 %v355
        %386 = vmatprep.subr.mxu0 0.0
        %387 = vmatpush1.msra.mxu0 %v356
        %388 = vmatprep.subr.mxu0 0.0
        %389 = vmatpush1.msra.mxu0 %v357
        %390 = vmatprep.subr.mxu0 0.0
        %391 = vmatpush1.msra.mxu0 0.0
        %392 = vmatprep.subr.mxu0 0.0
        %393 = vmatpush1.msra.mxu0 0.0
        %394 = vmatprep.subr.mxu0 0.0
        %395 = vmatpush1.msra.mxu0 0.0
        %396 = vmatprep.subr.mxu0 0.0
        %397 = vmatpush1.msra.mxu0 0.0
        %398 = vmatprep.subr.mxu0 0.0
        %399 = vmatpush1.msra.mxu0 0.0
        %400 = vmatprep.subr.mxu0 0.0
        %401 = vmatpush1.msra.mxu0 0.0
        %402 = vmatprep.subr.mxu0 0.0
        %403 = vmatpush1.msra.mxu0 0.0
        %404 = vmatprep.subr.mxu0 0.0
        %405 = vmatpush1.msra.mxu0 0.0
        %406 = vmatprep.subr.mxu0 0.0
        %407 = vmatpush1.msra.mxu0 0.0
        %408 = vmatprep.subr.mxu0 0.0
        %409 = vmatpush1.msra.mxu0 0.0
        %410 = vmatprep.subr.mxu0 0.0
        %411 = vmatpush1.msra.mxu0 0.0
        %412 = vmatprep.subr.mxu0 0.0
        %413 = vmatpush1.msra.mxu0 0.0
        %414 = vmatprep.subr.mxu0 0.0
        %415 = vmatpush1.msra.mxu0 0.0
        %416 = vmatprep.subr.mxu0 0.0
        %417 = vmatpush1.msra.mxu0 0.0
        %418 = vmatprep.subr.mxu0 0.0
        %419 = vmatpush1.msra.mxu0 0.0
        %420 = vmatprep.subr.mxu0 0.0
        %421 = vmatpush1.msra.mxu0 0.0
        %422 = vmatprep.mubr.f32.mxu0 0.0
        %423 = vmatmul.mubr.f32.gmra.mrb[0].mxu0 %v334
        %v424 = vpop.f32.mrb[0].mxu0
        %v425 = vadd.f32 0.0, %v424
        %v426 = vpop.f32.mrb[0].mxu0
        %427 = vmatprep.mubr.f32.mxu0 0.0
        %428 = vmatmul.mubr.f32.gmra.mrb[0].mxu0 %v335
        %v429 = vpop.f32.mrb[0].mxu0
        %v430 = vadd.f32 0.0, %v429
        %v431 = vpop.f32.mrb[0].mxu0
        %432 = vmatprep.mubr.f32.mxu0 0.0
        %433 = vmatmul.mubr.f32.gmra.mrb[0].mxu0 %v336
        %v434 = vpop.f32.mrb[0].mxu0
        %v435 = vadd.f32 0.0, %v434
        %v436 = vpop.f32.mrb[0].mxu0
        %437 = vmatprep.mubr.f32.mxu0 0.0
        %438 = vmatmul.mubr.f32.gmra.mrb[0].mxu0 %v337
        %v439 = vpop.f32.mrb[0].mxu0
        %v440 = vadd.f32 0.0, %v439
        %v441 = vpop.f32.mrb[0].mxu0
        %442 = vmatprep.mubr.f32.mxu0 0.0
        %443 = vmatmul.mubr.f32.gmra.mrb[0].mxu0 %v338
        %v444 = vpop.f32.mrb[0].mxu0
        %v445 = vadd.f32 0.0, %v444
        %v446 = vpop.f32.mrb[0].mxu0
        %447 = vmatprep.mubr.f32.mxu0 0.0
        %448 = vmatmul.mubr.f32.gmra.mrb[0].mxu0 %v339
        %v449 = vpop.f32.mrb[0].mxu0
        %v450 = vadd.f32 0.0, %v449
        %v451 = vpop.f32.mrb[0].mxu0
        %452 = vmatprep.mubr.f32.mxu0 0.0
        %453 = vmatmul.mubr.f32.gmra.mrb[0].mxu0 %v340
        %v454 = vpop.f32.mrb[0].mxu0
        %v455 = vadd.f32 0.0, %v454
        %v456 = vpop.f32.mrb[0].mxu0
        %457 = vmatprep.mubr.f32.mxu0 0.0
        %458 = vmatmul.mubr.f32.gmra.mrb[0].mxu0 %v341
        %v459 = vpop.f32.mrb[0].mxu0
        %v460 = vadd.f32 0.0, %v459
        %v461 = vpop.f32.mrb[0].mxu0
        %462 = vdwg.mxu0
        %v463 = vld [vmem:[%s280] sm:$0xff]
        %v464 = vld [vmem:[%s280 + $0x8] sm:$0xff]
        %v465 = vld [vmem:[%s280 + $0x10] sm:$0xff]
        %v466 = vld [vmem:[%s280 + $0x18] sm:$0xff]
        %v467 = vld [vmem:[%s280 + $0x20] sm:$0xff]
        %v468 = vld [vmem:[%s280 + $0x28] sm:$0xff]
        %v469 = vld [vmem:[%s280 + $0x30] sm:$0xff]
        %v470 = vld [vmem:[%s280 + $0x38] sm:$0xff]
        %v471 = vld [vmem:[%s280 + $0x40] sm:$0xff]
        %v472 = vld [vmem:[%s280 + $0x48] sm:$0xff]
        %v473 = vld [vmem:[%s280 + $0x50] sm:$0xff]
        %v474 = vld [vmem:[%s280 + $0x58] sm:$0xff]
        %v475 = vld [vmem:[%s280 + $0x60] sm:$0xff]
        %v476 = vld [vmem:[%s280 + $0x68] sm:$0xff]
        %v477 = vld [vmem:[%s280 + $0x70] sm:$0xff]
        %v478 = vld [vmem:[%s280 + $0x78] sm:$0xff]
        %479 = vmatprep.subr.mxu0 0.0
        %480 = vmatpush1.msra.mxu0 %v463
        %481 = vmatprep.subr.mxu0 0.0
        %482 = vmatpush1.msra.mxu0 %v464
        %483 = vmatprep.subr.mxu0 0.0
        %484 = vmatpush1.msra.mxu0 %v465
        %485 = vmatprep.subr.mxu0 0.0
        %486 = vmatpush1.msra.mxu0 %v466
        %487 = vmatprep.subr.mxu0 0.0
        %488 = vmatpush1.msra.mxu0 %v467
        %489 = vmatprep.subr.mxu0 0.0
        %490 = vmatpush1.msra.mxu0 %v468
        %491 = vmatprep.subr.mxu0 0.0
        %492 = vmatpush1.msra.mxu0 %v469
        %493 = vmatprep.subr.mxu0 0.0
        %494 = vmatpush1.msra.mxu0 %v470
        %495 = vmatprep.subr.mxu0 0.0
        %496 = vmatpush1.msra.mxu0 %v471
        %497 = vmatprep.subr.mxu0 0.0
        %498 = vmatpush1.msra.mxu0 %v472
        %499 = vmatprep.subr.mxu0 0.0
        %500 = vmatpush1.msra.mxu0 %v473
        %501 = vmatprep.subr.mxu0 0.0
        %502 = vmatpush1.msra.mxu0 %v474
        %503 = vmatprep.subr.mxu0 0.0
        %504 = vmatpush1.msra.mxu0 %v475
        %505 = vmatprep.subr.mxu0 0.0
        %506 = vmatpush1.msra.mxu0 %v476
        %507 = vmatprep.subr.mxu0 0.0
        %508 = vmatpush1.msra.mxu0 %v477
        %509 = vmatprep.subr.mxu0 0.0
        %510 = vmatpush1.msra.mxu0 %v478
        %511 = vmatprep.subr.mxu0 0.0
        %512 = vmatpush1.msra.mxu0 0.0
        %513 = vmatprep.subr.mxu0 0.0
        %514 = vmatpush1.msra.mxu0 0.0
        %515 = vmatprep.subr.mxu0 0.0
        %516 = vmatpush1.msra.mxu0 0.0
        %517 = vmatprep.subr.mxu0 0.0
        %518 = vmatpush1.msra.mxu0 0.0
        %519 = vmatprep.subr.mxu0 0.0
        %520 = vmatpush1.msra.mxu0 0.0
        %521 = vmatprep.subr.mxu0 0.0
        %522 = vmatpush1.msra.mxu0 0.0
        %523 = vmatprep.subr.mxu0 0.0
        %524 = vmatpush1.msra.mxu0 0.0
        %525 = vmatprep.subr.mxu0 0.0
        %526 = vmatpush1.msra.mxu0 0.0
        %527 = vmatprep.subr.mxu0 0.0
        %528 = vmatpush1.msra.mxu0 0.0
        %529 = vmatprep.subr.mxu0 0.0
        %530 = vmatpush1.msra.mxu0 0.0
        %531 = vmatprep.subr.mxu0 0.0
        %532 = vmatpush1.msra.mxu0 0.0
        %533 = vmatprep.subr.mxu0 0.0
        %534 = vmatpush1.msra.mxu0 0.0
        %535 = vmatprep.subr.mxu0 0.0
        %536 = vmatpush1.msra.mxu0 0.0
        %537 = vmatprep.subr.mxu0 0.0
        %538 = vmatpush1.msra.mxu0 0.0
        %539 = vmatprep.subr.mxu0 0.0
        %540 = vmatpush1.msra.mxu0 0.0
        %541 = vmatprep.subr.mxu0 0.0
        %542 = vmatpush1.msra.mxu0 0.0
        %543 = vmatprep.mubr.f32.mxu0 0.0
        %544 = vmatmul.mubr.f32.gmra.mrb[0].mxu0 %v334
        %v545 = vpop.f32.mrb[0].mxu0
        %v546 = vadd.f32 0.0, %v545
        %v547 = vpop.f32.mrb[0].mxu0
        %548 = vmatprep.mubr.f32.mxu0 0.0
        %549 = vmatmul.mubr.f32.gmra.mrb[0].mxu0 %v335
        %v550 = vpop.f32.mrb[0].mxu0
        %v551 = vadd.f32 0.0, %v550
        %v552 = vpop.f32.mrb[0].mxu0
        %553 = vmatprep.mubr.f32.mxu0 0.0
        %554 = vmatmul.mubr.f32.gmra.mrb[0].mxu0 %v336
        %v555 = vpop.f32.mrb[0].mxu0
        %v556 = vadd.f32 0.0, %v555
        %v557 = vpop.f32.mrb[0].mxu0
        %558 = vmatprep.mubr.f32.mxu0 0.0
        %559 = vmatmul.mubr.f32.gmra.mrb[0].mxu0 %v337
        %v560 = vpop.f32.mrb[0].mxu0
        %v561 = vadd.f32 0.0, %v560
        %v562 = vpop.f32.mrb[0].mxu0
        %563 = vmatprep.mubr.f32.mxu0 0.0
        %564 = vmatmul.mubr.f32.gmra.mrb[0].mxu0 %v338
        %v565 = vpop.f32.mrb[0].mxu0
        %v566 = vadd.f32 0.0, %v565
        %v567 = vpop.f32.mrb[0].mxu0
        %568 = vmatprep.mubr.f32.mxu0 0.0
        %569 = vmatmul.mubr.f32.gmra.mrb[0].mxu0 %v339
        %v570 = vpop.f32.mrb[0].mxu0
        %v571 = vadd.f32 0.0, %v570
        %v572 = vpop.f32.mrb[0].mxu0
        %573 = vmatprep.mubr.f32.mxu0 0.0
        %574 = vmatmul.mubr.f32.gmra.mrb[0].mxu0 %v340
        %v575 = vpop.f32.mrb[0].mxu0
        %v576 = vadd.f32 0.0, %v575
        %v577 = vpop.f32.mrb[0].mxu0
        %578 = vmatprep.mubr.f32.mxu0 0.0
        %579 = vmatmul.mubr.f32.gmra.mrb[0].mxu0 %v341
        %v580 = vpop.f32.mrb[0].mxu0
        %v581 = vadd.f32 0.0, %v580
        %v582 = vpop.f32.mrb[0].mxu0
        %583 = vdwg.mxu0
        %v584 = vxor.u32 %v425, 2147483648
        %v585 = vxor.u32 %v430, 2147483648
        %v586 = vxor.u32 %v435, 2147483648
        %v587 = vxor.u32 %v440, 2147483648
        %v588 = vxor.u32 %v445, 2147483648
        %v589 = vxor.u32 %v450, 2147483648
        %v590 = vxor.u32 %v455, 2147483648
        %v591 = vxor.u32 %v460, 2147483648
        %v592 = vmul.f32 %v584, 1.442695
        %v593 = vpow.pop %v592
        %v594 = vmul.f32 %v585, 1.442695
        %v595 = vpow.pop %v594
        %v596 = vmul.f32 %v586, 1.442695
        %v597 = vpow.pop %v596
        %v598 = vmul.f32 %v587, 1.442695
        %v599 = vpow.pop %v598
        %v600 = vmul.f32 %v588, 1.442695
        %v601 = vpow.pop %v600
        %v602 = vmul.f32 %v589, 1.442695
        %v603 = vpow.pop %v602
        %v604 = vmul.f32 %v590, 1.442695
        %v605 = vpow.pop %v604
        %v606 = vmul.f32 %v591, 1.442695
        %v607 = vpow.pop %v606
        %v608 = vadd.f32 %v593, 1.0
        %v609 = vadd.f32 %v595, 1.0
        %v610 = vadd.f32 %v597, 1.0
        %v611 = vadd.f32 %v599, 1.0
        %v612 = vadd.f32 %v601, 1.0
        %v613 = vadd.f32 %v603, 1.0
        %v614 = vadd.f32 %v605, 1.0
        %v615 = vadd.f32 %v607, 1.0
        %v616 = vrcp.pop %v608
        %v617 = vmul.f32 1.0, %v616
        %v618 = vrcp.pop %v609
        %v619 = vmul.f32 1.0, %v618
        %v620 = vrcp.pop %v610
        %v621 = vmul.f32 1.0, %v620
        %v622 = vrcp.pop %v611
        %v623 = vmul.f32 1.0, %v622
        %v624 = vrcp.pop %v612
        %v625 = vmul.f32 1.0, %v624
        %v626 = vrcp.pop %v613
        %v627 = vmul.f32 1.0, %v626
        %v628 = vrcp.pop %v614
        %v629 = vmul.f32 1.0, %v628
        %v630 = vrcp.pop %v615
        %v631 = vmul.f32 1.0, %v630
        %v632 = vmul.f32 %v425, %v617
        %v633 = vmul.f32 %v430, %v619
        %v634 = vmul.f32 %v435, %v621
        %v635 = vmul.f32 %v440, %v623
        %v636 = vmul.f32 %v445, %v625
        %v637 = vmul.f32 %v450, %v627
        %v638 = vmul.f32 %v455, %v629
        %v639 = vmul.f32 %v460, %v631
        %v640 = vmul.f32 %v632, %v546
        %v641 = vmul.f32 %v633, %v551
        %v642 = vmul.f32 %v634, %v556
        %v643 = vmul.f32 %v635, %v561
        %v644 = vmul.f32 %v636, %v566
        %v645 = vmul.f32 %v637, %v571
        %v646 = vmul.f32 %v638, %v576
        %v647 = vmul.f32 %v639, %v581
        %v648 = vld [vmem:[#allocation10] sm:$0xff]
        %v649 = vld [vmem:[#allocation10 + $0x8] sm:$0xff]
        %v650 = vld [vmem:[#allocation10 + $0x10] sm:$0xff]
        %v651 = vld [vmem:[#allocation10 + $0x18] sm:$0xff]
        %v652 = vld [vmem:[#allocation10 + $0x20] sm:$0xff]
        %v653 = vld [vmem:[#allocation10 + $0x28] sm:$0xff]
        %v654 = vld [vmem:[#allocation10 + $0x30] sm:$0xff]
        %v655 = vld [vmem:[#allocation10 + $0x38] sm:$0xff]
        %v656 = vld [vmem:[%s289] sm:$0xff]
        %v657 = vld [vmem:[%s289 + $0x8] sm:$0xff]
        %v658 = vld [vmem:[%s289 + $0x10] sm:$0xff]
        %v659 = vld [vmem:[%s289 + $0x18] sm:$0xff]
        %v660 = vld [vmem:[%s289 + $0x20] sm:$0xff]
        %v661 = vld [vmem:[%s289 + $0x28] sm:$0xff]
        %v662 = vld [vmem:[%s289 + $0x30] sm:$0xff]
        %v663 = vld [vmem:[%s289 + $0x38] sm:$0xff]
        %v664 = vld [vmem:[%s289 + $0x40] sm:$0xff]
        %v665 = vld [vmem:[%s289 + $0x48] sm:$0xff]
        %v666 = vld [vmem:[%s289 + $0x50] sm:$0xff]
        %v667 = vld [vmem:[%s289 + $0x58] sm:$0xff]
        %v668 = vld [vmem:[%s289 + $0x60] sm:$0xff]
        %v669 = vld [vmem:[%s289 + $0x68] sm:$0xff]
        %v670 = vld [vmem:[%s289 + $0x70] sm:$0xff]
        %v671 = vld [vmem:[%s289 + $0x78] sm:$0xff]
        %672 = vmatprep.subr.mxu0 0.0
        %673 = vmatpush1.msra.mxu0 %v656
        %674 = vmatprep.subr.mxu0 0.0
        %675 = vmatpush1.msra.mxu0 %v657
        %676 = vmatprep.subr.mxu0 0.0
        %677 = vmatpush1.msra.mxu0 %v658
        %678 = vmatprep.subr.mxu0 0.0
        %679 = vmatpush1.msra.mxu0 %v659
        %680 = vmatprep.subr.mxu0 0.0
        %681 = vmatpush1.msra.mxu0 %v660
        %682 = vmatprep.subr.mxu0 0.0
        %683 = vmatpush1.msra.mxu0 %v661
        %684 = vmatprep.subr.mxu0 0.0
        %685 = vmatpush1.msra.mxu0 %v662
        %686 = vmatprep.subr.mxu0 0.0
        %687 = vmatpush1.msra.mxu0 %v663
        %688 = vmatprep.subr.mxu0 0.0
        %689 = vmatpush1.msra.mxu0 %v664
        %690 = vmatprep.subr.mxu0 0.0
        %691 = vmatpush1.msra.mxu0 %v665
        %692 = vmatprep.subr.mxu0 0.0
        %693 = vmatpush1.msra.mxu0 %v666
        %694 = vmatprep.subr.mxu0 0.0
        %695 = vmatpush1.msra.mxu0 %v667
        %696 = vmatprep.subr.mxu0 0.0
        %697 = vmatpush1.msra.mxu0 %v668
        %698 = vmatprep.subr.mxu0 0.0
        %699 = vmatpush1.msra.mxu0 %v669
        %700 = vmatprep.subr.mxu0 0.0
        %701 = vmatpush1.msra.mxu0 %v670
        %702 = vmatprep.subr.mxu0 0.0
        %703 = vmatpush1.msra.mxu0 %v671
        %704 = vmatprep.subr.mxu0 0.0
        %705 = vmatpush1.msra.mxu0 0.0
        %706 = vmatprep.subr.mxu0 0.0
        %707 = vmatpush1.msra.mxu0 0.0
        %708 = vmatprep.subr.mxu0 0.0
        %709 = vmatpush1.msra.mxu0 0.0
        %710 = vmatprep.subr.mxu0 0.0
        %711 = vmatpush1.msra.mxu0 0.0
        %712 = vmatprep.subr.mxu0 0.0
        %713 = vmatpush1.msra.mxu0 0.0
        %714 = vmatprep.subr.mxu0 0.0
        %715 = vmatpush1.msra.mxu0 0.0
        %716 = vmatprep.subr.mxu0 0.0
        %717 = vmatpush1.msra.mxu0 0.0
        %718 = vmatprep.subr.mxu0 0.0
        %719 = vmatpush1.msra.mxu0 0.0
        %720 = vmatprep.subr.mxu0 0.0
        %721 = vmatpush1.msra.mxu0 0.0
        %722 = vmatprep.subr.mxu0 0.0
        %723 = vmatpush1.msra.mxu0 0.0
        %724 = vmatprep.subr.mxu0 0.0
        %725 = vmatpush1.msra.mxu0 0.0
        %726 = vmatprep.subr.mxu0 0.0
        %727 = vmatpush1.msra.mxu0 0.0
        %728 = vmatprep.subr.mxu0 0.0
        %729 = vmatpush1.msra.mxu0 0.0
        %730 = vmatprep.subr.mxu0 0.0
        %731 = vmatpush1.msra.mxu0 0.0
        %732 = vmatprep.subr.mxu0 0.0
        %733 = vmatpush1.msra.mxu0 0.0
        %734 = vmatprep.subr.mxu0 0.0
        %735 = vmatpush1.msra.mxu0 0.0
        %736 = vmatprep.mubr.f32.mxu0 0.0
        %737 = vmatmul.mubr.f32.gmra.mrb[0].mxu0 %v640
        %v738 = vpop.f32.mrb[0].mxu0
        %v739 = vadd.f32 0.0, %v738
        %v740 = vpop.f32.mrb[0].mxu0
        %741 = vmatprep.mubr.f32.mxu0 0.0
        %742 = vmatmul.mubr.f32.gmra.mrb[0].mxu0 %v641
        %v743 = vpop.f32.mrb[0].mxu0
        %v744 = vadd.f32 0.0, %v743
        %v745 = vpop.f32.mrb[0].mxu0
        %746 = vmatprep.mubr.f32.mxu0 0.0
        %747 = vmatmul.mubr.f32.gmra.mrb[0].mxu0 %v642
        %v748 = vpop.f32.mrb[0].mxu0
        %v749 = vadd.f32 0.0, %v748
        %v750 = vpop.f32.mrb[0].mxu0
        %751 = vmatprep.mubr.f32.mxu0 0.0
        %752 = vmatmul.mubr.f32.gmra.mrb[0].mxu0 %v643
        %v753 = vpop.f32.mrb[0].mxu0
        %v754 = vadd.f32 0.0, %v753
        %v755 = vpop.f32.mrb[0].mxu0
        %756 = vmatprep.mubr.f32.mxu0 0.0
        %757 = vmatmul.mubr.f32.gmra.mrb[0].mxu0 %v644
        %v758 = vpop.f32.mrb[0].mxu0
        %v759 = vadd.f32 0.0, %v758
        %v760 = vpop.f32.mrb[0].mxu0
        %761 = vmatprep.mubr.f32.mxu0 0.0
        %762 = vmatmul.mubr.f32.gmra.mrb[0].mxu0 %v645
        %v763 = vpop.f32.mrb[0].mxu0
        %v764 = vadd.f32 0.0, %v763
        %v765 = vpop.f32.mrb[0].mxu0
        %766 = vmatprep.mubr.f32.mxu0 0.0
        %767 = vmatmul.mubr.f32.gmra.mrb[0].mxu0 %v646
        %v768 = vpop.f32.mrb[0].mxu0
        %v769 = vadd.f32 0.0, %v768
        %v770 = vpop.f32.mrb[0].mxu0
        %771 = vmatprep.mubr.f32.mxu0 0.0
        %772 = vmatmul.mubr.f32.gmra.mrb[0].mxu0 %v647
        %v773 = vpop.f32.mrb[0].mxu0
        %v774 = vadd.f32 0.0, %v773
        %v775 = vpop.f32.mrb[0].mxu0
        %776 = vdwg.mxu0
        %v777 = vadd.f32 %v648, %v739
        %v778 = vadd.f32 %v649, %v744
        %v779 = vadd.f32 %v650, %v749
        %v780 = vadd.f32 %v651, %v754
        %v781 = vadd.f32 %v652, %v759
        %v782 = vadd.f32 %v653, %v764
        %v783 = vadd.f32 %v654, %v769
        %v784 = vadd.f32 %v655, %v774
        %785 = vst [vmem:[#allocation10] sm:$0xff] %v777
        %786 = vst [vmem:[#allocation10 + $0x8] sm:$0xff] %v778
        %787 = vst [vmem:[#allocation10 + $0x10] sm:$0xff] %v779
        %788 = vst [vmem:[#allocation10 + $0x18] sm:$0xff] %v780
        %789 = vst [vmem:[#allocation10 + $0x20] sm:$0xff] %v781
        %790 = vst [vmem:[#allocation10 + $0x28] sm:$0xff] %v782
        %791 = vst [vmem:[#allocation10 + $0x30] sm:$0xff] %v783
        %792 = vst [vmem:[#allocation10 + $0x38] sm:$0xff] %v784
        // Predicated region
        $region57: #{feed_forward.1} parent=35 // pred_check
          %p793 = pneg %p157
        $region58: #{feed_forward.1} parent=35 // pred_check_branch
          %795 = sbr.rel (%p793) target = $region60
        $region59: #{feed_forward.1} parent=35 // pred_region
          %s796 = smul.u32 8, %s27
          %s798 = ssub.s32 1024, 1024
          %799 = vsyncadd [#allocation4], %s798
          %s800 = smul.addr %s796, 128
          %s801 = scalar_lea.hbm %s4, %s800
          %s802 = sshll.u32 [#allocation10], 4
          %s803 = int_to_ptr.vmem [resolvable:$true] %s802
          %808 = dma.vmem_to_hbm [thread:$0]  %s803, 1024, %s801, [#allocation4], 128, 128, 8
        $region60: #{feed_forward.1} parent=35 // pred_fallthru
          _
        // Predicated region
        $region61: #{feed_forward.1} parent=35 // pred_check
          %p809 = pneg %p157
        $region62: #{feed_forward.1} parent=35 // pred_check_branch
          %811 = sbr.rel (%p809) target = $region64
        $region63: #{feed_forward.1} parent=35 // pred_region
          %812 = dma.done [#allocation4], 1024
        $region64: #{feed_forward.1} parent=35 // pred_fallthru
          _
      $region36: #{feed_forward.1} parent=5 // pred_fallthru
        _
      %p813 = scmp.le.s32.totalorder 2, %s18
      // Predicated region
      $region65: #{feed_forward.1} parent=5 // pred_check
        %p814 = pneg %p813
      $region66: #{feed_forward.1} parent=5 // pred_check_branch
        %816 = sbr.rel (%p814) target = $region68
      $region67: #{feed_forward.1} parent=5 // pred_region
        %s817 = ssub.s32 %s18, 2
      $region68: #{feed_forward.1} parent=5 // pred_fallthru
        _
    $region6: #{feed_forward.1} parent=1 // loop_footer
      %s22 = sadd.s32 1, %s18
    $region7: #{feed_forward.1} parent=1 // loop_footer_branch
      %17 = sbr.rel target = $region3
    $region8: #{feed_forward.1} parent=1 // loop_exit
      _
    %818 = vsyncpa [#allocation3], 1
    %s819 = scalar_lea.sflag [#allocation3], 1
    %820 = vsyncpa %s819, 1
    %821 = vsyncpa [#allocation6], 1
    %s822 = scalar_lea.sflag [#allocation6], 1
    %823 = vsyncpa %s822, 1
    %824 = vsyncpa [#allocation9], 1
    %s825 = scalar_lea.sflag [#allocation9], 1
    %826 = vsyncpa %s825, 1
    %827 = vsyncpa [#allocation4], 1
    %s828 = scalar_lea.sflag [#allocation4], 1
    %829 = vsyncpa %s828, 1

</llo_original>
